<compile_context>
chip_gen: v7x
topology: tpu7x:2x2x1
jax: 0.10.0
libtpu: 0.0.40
codegen_flags: <defaults>
</compile_context>

<pallas_src>
import functools

import jax
import jax.numpy as jnp
from jax.experimental import pallas as pl
from jax.experimental.pallas import tpu as pltpu

N_SPAN = (2, 3, 4)
BN_EPS = 1e-5


def _ngram_cnn_kernel(t_pad, x_ref, wc_ref, sh_ref, mask_ref, w1_ref, b1_ref,
                      w2_ref, b2_ref, o_ref):
    """Fused NgramCNN forward for one batch tile.

    x_ref:   (tb, t_pad, n_max*H) lane-dense im2col slab
    wc_ref:  (n_max*H, 3F) merged conv weight (BN scale folded, zero-padded rows)
    sh_ref:  (1, 3F)      folded conv-bias/BN shift
    mask_ref:(t_pad, 3F)  1.0 for valid windows, 0.0 for padded windows
    w1_ref:  (3F, 1024)   Linear1 weight (duplicated modules' row blocks summed)
    b1_ref:  (1, 1024); w2_ref: (1024, OUT); b2_ref: (1, OUT); o_ref: (tb, OUT)
    """
    tb, _, kw = x_ref.shape
    # (tb, t_pad, kw) -> (tb*t_pad, kw): tile-aligned view (t_pad multiple of 8).
    x2 = x_ref[...].reshape(tb * t_pad, kw)
    # All three convs + folded BatchNorm in a single MXU matmul, f32 accumulation.
    y = jnp.dot(x2, wc_ref[...], preferred_element_type=jnp.float32)
    y = jnp.maximum(y + sh_ref[...], 0.0)                       # shift + ReLU
    # Mask padded / invalid windows (safe post-ReLU: all values >= 0), then maxpool.
    y = y.reshape(tb, t_pad, -1) * mask_ref[...][None]
    feat = jnp.max(y, axis=1)                                   # (tb, 3F)
    # First Linear (duplicated feature blocks pre-summed host-side), ReLU.
    h = jnp.dot(feat, w1_ref[...], preferred_element_type=jnp.float32) + b1_ref[...]
    h = jnp.maximum(h, 0.0)
    # Dropout is identity at inference time.
    logits = jnp.dot(h, w2_ref[...], preferred_element_type=jnp.float32) + b2_ref[...]
    o_ref[...] = logits.astype(o_ref.dtype)


def ngram_cnn_forward(x, params, n_span=N_SPAN, eps=BN_EPS, block_b=256):
    """x: (B, S, H) float32. params: PyTorch-layout parameters (see __main__)."""
    B, S, H = x.shape
    F = params["conv_w"][0].shape[0]
    n_max = max(n_span)
    F3 = F * len(n_span)
    kw = n_max * H
    hidden1 = params["lin1_w"].shape[0]
    out_size = params["lin2_w"].shape[0]

    # ---- one-time host-side constant folding ---------------------------------
    w1_t = params["lin1_w"].T.astype(jnp.float32)               # (6F, 1024)
    wc_blocks, sh_blocks, w1_blocks = [], [], []
    for i, n in enumerate(n_span):
        scale = params["bn_gamma"][i] / jnp.sqrt(params["bn_var"][i] + eps)   # (F,)
        w = params["conv_w"][i].astype(jnp.float32) * scale[:, None, None]    # (F,n,H)
        w = jnp.pad(w, ((0, 0), (0, n_max - n), (0, 0)))        # common window width n_max
        wc_blocks.append(w.reshape(F, kw).T)                    # (kw, F)
        sh_blocks.append(scale * (params["conv_b"][i] - params["bn_mean"][i])
                         + params["bn_beta"][i])                # (F,)
        # Each conv module appears twice in cnn_list -> its feature is duplicated;
        # sum the two corresponding row blocks of Linear1 (exact algebra).
        w1_blocks.append(w1_t[2 * i * F:(2 * i + 1) * F]
                         + w1_t[(2 * i + 1) * F:(2 * i + 2) * F])             # (F,1024)
    wc = jnp.concatenate(wc_blocks, axis=1).astype(jnp.float32)               # (kw, 3F)
    shift = jnp.concatenate(sh_blocks).reshape(1, F3).astype(jnp.float32)     # (1, 3F)
    w1 = jnp.concatenate(w1_blocks, axis=0).astype(jnp.float32)               # (3F, 1024)
    b1 = params["lin1_b"].reshape(1, hidden1).astype(jnp.float32)
    w2 = params["lin2_w"].T.astype(jnp.float32)                               # (1024, OUT)
    b2 = params["lin2_b"].reshape(1, out_size).astype(jnp.float32)

    # Valid-window mask: window j of width n is valid iff j < S - n + 1.
    t_pad = ((S - min(n_span) + 1 + 7) // 8) * 8                # sublane-aligned #windows
    j = jnp.arange(t_pad)[:, None]
    mask = jnp.concatenate(
        [jnp.broadcast_to((j < (S - n + 1)).astype(jnp.float32), (t_pad, F))
         for n in n_span], axis=1)                              # (t_pad, 3F)

    # Lane-dense im2col built once in the wrapper (tiny; removes per-step
    # in-kernel lane concats / unaligned reshapes from the critical path).
    s_pad = t_pad + n_max - 1
    x_p = jnp.pad(x.astype(jnp.float32), ((0, 0), (0, s_pad - S), (0, 0)))
    x_col = jnp.concatenate([x_p[:, k:k + t_pad, :] for k in range(n_max)],
                            axis=-1)                            # (B, t_pad, kw)

    # ---- batch tiling ---------------------------------------------------------
    if B <= 8:
        tb, Bp = B, B                                           # single tile, full batch
    else:
        half = -(-B // 2)                                       # >=2 grid steps (v7x megacore)
        tb = min(block_b, ((half + 7) // 8) * 8)                # sublane-aligned tile
        pad_b = (-B) % tb
        Bp = B + pad_b
        if pad_b:
            x_col = jnp.pad(x_col, ((0, pad_b), (0, 0), (0, 0)))
    grid = (Bp // tb,)

    x_spec = pl.BlockSpec((tb, t_pad, kw), lambda b: (b, 0, 0))
    out_spec = pl.BlockSpec((tb, out_size), lambda b: (b, 0))
    weights = [wc, shift, mask, w1, b1, w2, b2]

    def _rep_spec(a):
        nd = a.ndim
        return pl.BlockSpec(a.shape, lambda b, _nd=nd: (0,) * _nd)

    out = pl.pallas_call(
        functools.partial(_ngram_cnn_kernel, t_pad),
        out_shape=jax.ShapeDtypeStruct((Bp, out_size), jnp.float32),
        grid_spec=pltpu.PrefetchScalarGridSpec(
            num_scalar_prefetch=0,
            grid=grid,
            in_specs=[x_spec] + [_rep_spec(a) for a in weights],
            out_specs=out_spec,
        ),
        compiler_params=pltpu.CompilerParams(
            dimension_semantics=("parallel",),
            vmem_limit_bytes=32 * 1024 * 1024,
        ),
    )(x_col, *weights)
    return out[:B]


def ngram_cnn_ref(x, params, n_span=N_SPAN, eps=BN_EPS):
    """Pure-JAX reference mirroring the PyTorch forward (eval mode)."""
    B, S, H = x.shape
    feats = []
    for i, n in enumerate(n_span):
        w, b = params["conv_w"][i], params["conv_b"][i]
        gamma, beta = params["bn_gamma"][i], params["bn_beta"][i]
        mean, var = params["bn_mean"][i], params["bn_var"][i]
        t = S - n + 1
        x_win = jnp.stack([x[:, j:j + n, :] for j in range(t)], axis=1)  # (B,T,n,H)
        y = jnp.einsum('btnh,fnh->btf', x_win, w) + b                    # Conv2d
        y = (y - mean) / jnp.sqrt(var + eps) * gamma + beta              # BatchNorm2d (eval)
        y = jnp.maximum(y, 0.0)                                          # ReLU
        f = jnp.max(y, axis=1)                                           # MaxPool2d
        feats += [f, f]                                                  # module listed twice
    feat = jnp.concatenate(feats, axis=-1)                               # (B, 6F)
    h = jnp.maximum(feat @ params["lin1_w"].T + params["lin1_b"], 0.0)
    return h @ params["lin2_w"].T + params["lin2_b"]                     # dropout = identity


if __name__ == "__main__":
    B, S, H = 2, 8, 32
    F = 64
    OUT = 128          # lane-dense output width
    n_span = N_SPAN

    keys = iter(jax.random.split(jax.random.PRNGKey(0), 24))

    params = {"conv_w": [], "conv_b": [], "bn_gamma": [], "bn_beta": [],
              "bn_mean": [], "bn_var": []}
    for n in n_span:
        params["conv_w"].append(0.05 * jax.random.normal(next(keys), (F, n, H), jnp.float32))
        params["conv_b"].append(0.05 * jax.random.normal(next(keys), (F,), jnp.float32))
        params["bn_gamma"].append(1.0 + 0.1 * jax.random.normal(next(keys), (F,), jnp.float32))
        params["bn_beta"].append(0.1 * jax.random.normal(next(keys), (F,), jnp.float32))
        params["bn_mean"].append(0.1 * jax.random.normal(next(keys), (F,), jnp.float32))
        params["bn_var"].append(jax.random.uniform(next(keys), (F,), jnp.float32, 0.5, 1.5))
    params["lin1_w"] = 0.05 * jax.random.normal(next(keys), (1024, 2 * len(n_span) * F), jnp.float32)
    params["lin1_b"] = 0.05 * jax.random.normal(next(keys), (1024,), jnp.float32)
    params["lin2_w"] = 0.05 * jax.random.normal(next(keys), (OUT, 1024), jnp.float32)
    params["lin2_b"] = 0.05 * jax.random.normal(next(keys), (OUT,), jnp.float32)

    x = jax.random.normal(next(keys), (B, S, H), jnp.float32)

    out = ngram_cnn_forward(x, params)
    out = jax.block_until_ready(out)

    ref = ngram_cnn_ref(x, params)
    assert out.shape == (B, OUT)
    assert jnp.allclose(out, ref, atol=2e-4, rtol=2e-4), (
        f"mismatch vs reference, max abs diff = {jnp.max(jnp.abs(out - ref))}")

    print("KERNEL_OK")
</pallas_src>

<mosaic_0001>
module attributes {stable_mosaic.version = 11 : i64} {
  func.func @_ngram_cnn_kernel(%arg0: i32, %arg1: memref<2x8x128xf32, #tpu.memory_space<vmem>>, %arg2: memref<128x192xf32, #tpu.memory_space<vmem>>, %arg3: memref<1x192xf32, #tpu.memory_space<vmem>>, %arg4: memref<8x192xf32, #tpu.memory_space<vmem>>, %arg5: memref<192x1024xf32, #tpu.memory_space<vmem>>, %arg6: memref<1x1024xf32, #tpu.memory_space<vmem>>, %arg7: memref<1024x128xf32, #tpu.memory_space<vmem>>, %arg8: memref<1x128xf32, #tpu.memory_space<vmem>>, %arg9: memref<2x128xf32, #tpu.memory_space<vmem>>) attributes {dimension_semantics = [#tpu.dimension_semantics<parallel>], iteration_bounds = array<i64: 1>, scalar_prefetch = 0 : i64, scratch_operands = 0 : i64, tpu.core_type = #tpu.core_type<tc>, window_params = [{transform_indices = @transform_0, window_bounds = array<i64: 2, 8, 128>}, {pipeline_mode = #tpu.pipeline_mode<synchronous>, transform_indices = @transform_1, window_bounds = array<i64: 128, 192>}, {pipeline_mode = #tpu.pipeline_mode<synchronous>, transform_indices = @transform_2, window_bounds = array<i64: 1, 192>}, {pipeline_mode = #tpu.pipeline_mode<synchronous>, transform_indices = @transform_3, window_bounds = array<i64: 8, 192>}, {pipeline_mode = #tpu.pipeline_mode<synchronous>, transform_indices = @transform_4, window_bounds = array<i64: 192, 1024>}, {pipeline_mode = #tpu.pipeline_mode<synchronous>, transform_indices = @transform_5, window_bounds = array<i64: 1, 1024>}, {pipeline_mode = #tpu.pipeline_mode<synchronous>, transform_indices = @transform_6, window_bounds = array<i64: 1024, 128>}, {pipeline_mode = #tpu.pipeline_mode<synchronous>, transform_indices = @transform_7, window_bounds = array<i64: 1, 128>}, {transform_indices = @transform_8, window_bounds = array<i64: 2, 128>}]} {
    %c0 = arith.constant 0 : index
    %c0_0 = arith.constant 0 : index
    %c0_1 = arith.constant 0 : index
    %0 = vector.load %arg1[%c0, %c0_0, %c0_1] : memref<2x8x128xf32, #tpu.memory_space<vmem>>, vector<2x8x128xf32>
    %1 = vector.shape_cast %0 : vector<2x8x128xf32> to vector<16x128xf32>
    %c0_2 = arith.constant 0 : index
    %c0_3 = arith.constant 0 : index
    %2 = vector.load %arg2[%c0_2, %c0_3] : memref<128x192xf32, #tpu.memory_space<vmem>>, vector<128x192xf32>
    %cst = arith.constant dense<0.000000e+00> : vector<16x192xf32>
    %3 = tpu.matmul %1, %2, %cst {dimension_numbers = #tpu.dot_dimension_numbers<[1], [0], [0], [1], [0, 0, 1, 1], [], []>} : vector<16x128xf32>, vector<128x192xf32>, vector<16x192xf32> -> vector<16x192xf32>
    %c0_4 = arith.constant 0 : index
    %c0_5 = arith.constant 0 : index
    %4 = vector.load %arg3[%c0_4, %c0_5] : memref<1x192xf32, #tpu.memory_space<vmem>>, vector<1x192xf32>
    %5 = vector.broadcast %4 : vector<1x192xf32> to vector<16x192xf32>
    %6 = arith.addf %3, %5 : vector<16x192xf32>
    %cst_6 = arith.constant 0.000000e+00 : f32
    %7 = vector.broadcast %cst_6 : f32 to vector<16x192xf32>
    %8 = arith.maximumf %6, %7 : vector<16x192xf32>
    %9 = vector.shape_cast %8 : vector<16x192xf32> to vector<2x8x192xf32>
    %c0_7 = arith.constant 0 : index
    %c0_8 = arith.constant 0 : index
    %10 = vector.load %arg4[%c0_7, %c0_8] : memref<8x192xf32, #tpu.memory_space<vmem>>, vector<8x192xf32>
    %11 = vector.shape_cast %10 : vector<8x192xf32> to vector<1x8x192xf32>
    %12 = vector.broadcast %11 : vector<1x8x192xf32> to vector<2x8x192xf32>
    %13 = arith.mulf %9, %12 : vector<2x8x192xf32>
    %cst_9 = arith.constant dense<0xFF800000> : vector<2x192xf32>
    %14 = vector.multi_reduction <maximumf>, %13, %cst_9 [1] : vector<2x8x192xf32> to vector<2x192xf32>
    %c0_10 = arith.constant 0 : index
    %c0_11 = arith.constant 0 : index
    %15 = vector.load %arg5[%c0_10, %c0_11] : memref<192x1024xf32, #tpu.memory_space<vmem>>, vector<192x1024xf32>
    %cst_12 = arith.constant dense<0.000000e+00> : vector<2x1024xf32>
    %16 = tpu.matmul %14, %15, %cst_12 {dimension_numbers = #tpu.dot_dimension_numbers<[1], [0], [0], [1], [0, 0, 1, 1], [], []>} : vector<2x192xf32>, vector<192x1024xf32>, vector<2x1024xf32> -> vector<2x1024xf32>
    %c0_13 = arith.constant 0 : index
    %c0_14 = arith.constant 0 : index
    %17 = vector.load %arg6[%c0_13, %c0_14] : memref<1x1024xf32, #tpu.memory_space<vmem>>, vector<1x1024xf32>
    %18 = vector.broadcast %17 : vector<1x1024xf32> to vector<2x1024xf32>
    %19 = arith.addf %16, %18 : vector<2x1024xf32>
    %cst_15 = arith.constant 0.000000e+00 : f32
    %20 = vector.broadcast %cst_15 : f32 to vector<2x1024xf32>
    %21 = arith.maximumf %19, %20 : vector<2x1024xf32>
    %c0_16 = arith.constant 0 : index
    %c0_17 = arith.constant 0 : index
    %22 = vector.load %arg7[%c0_16, %c0_17] : memref<1024x128xf32, #tpu.memory_space<vmem>>, vector<1024x128xf32>
    %cst_18 = arith.constant dense<0.000000e+00> : vector<2x128xf32>
    %23 = tpu.matmul %21, %22, %cst_18 {dimension_numbers = #tpu.dot_dimension_numbers<[1], [0], [0], [1], [0, 0, 1, 1], [], []>} : vector<2x1024xf32>, vector<1024x128xf32>, vector<2x128xf32> -> vector<2x128xf32>
    %c0_19 = arith.constant 0 : index
    %c0_20 = arith.constant 0 : index
    %24 = vector.load %arg8[%c0_19, %c0_20] : memref<1x128xf32, #tpu.memory_space<vmem>>, vector<1x128xf32>
    %25 = vector.broadcast %24 : vector<1x128xf32> to vector<2x128xf32>
    %26 = arith.addf %23, %25 : vector<2x128xf32>
    %c0_21 = arith.constant 0 : index
    %c0_22 = arith.constant 0 : index
    %27 = vector.load %arg9[%c0_21, %c0_22] : memref<2x128xf32, #tpu.memory_space<vmem>>, vector<2x128xf32>
    tpu.vector_store %arg9[%c0_21, %c0_22], %26 {strides = array<i32>} : memref<2x128xf32, #tpu.memory_space<vmem>>, vector<2x128xf32>,
    return
  }
  func.func @transform_0(%arg0: i32) -> (i32, i32, i32) {
    %c0_i32 = arith.constant 0 : i32
    %c0_i32_0 = arith.constant 0 : i32
    %c0_i32_1 = arith.constant 0 : i32
    return %arg0, %c0_i32, %c0_i32_0 : i32, i32, i32
  }
  func.func @transform_1(%arg0: i32) -> (i32, i32) {
    %c0_i32 = arith.constant 0 : i32
    %c0_i32_0 = arith.constant 0 : i32
    %c0_i32_1 = arith.constant 0 : i32
    return %c0_i32, %c0_i32_0 : i32, i32
  }
  func.func @transform_2(%arg0: i32) -> (i32, i32) {
    %c0_i32 = arith.constant 0 : i32
    %c0_i32_0 = arith.constant 0 : i32
    %c0_i32_1 = arith.constant 0 : i32
    return %c0_i32, %c0_i32_0 : i32, i32
  }
  func.func @transform_3(%arg0: i32) -> (i32, i32) {
    %c0_i32 = arith.constant 0 : i32
    %c0_i32_0 = arith.constant 0 : i32
    %c0_i32_1 = arith.constant 0 : i32
    return %c0_i32, %c0_i32_0 : i32, i32
  }
  func.func @transform_4(%arg0: i32) -> (i32, i32) {
    %c0_i32 = arith.constant 0 : i32
    %c0_i32_0 = arith.constant 0 : i32
    %c0_i32_1 = arith.constant 0 : i32
    return %c0_i32, %c0_i32_0 : i32, i32
  }
  func.func @transform_5(%arg0: i32) -> (i32, i32) {
    %c0_i32 = arith.constant 0 : i32
    %c0_i32_0 = arith.constant 0 : i32
    %c0_i32_1 = arith.constant 0 : i32
    return %c0_i32, %c0_i32_0 : i32, i32
  }
  func.func @transform_6(%arg0: i32) -> (i32, i32) {
    %c0_i32 = arith.constant 0 : i32
    %c0_i32_0 = arith.constant 0 : i32
    %c0_i32_1 = arith.constant 0 : i32
    return %c0_i32, %c0_i32_0 : i32, i32
  }
  func.func @transform_7(%arg0: i32) -> (i32, i32) {
    %c0_i32 = arith.constant 0 : i32
    %c0_i32_0 = arith.constant 0 : i32
    %c0_i32_1 = arith.constant 0 : i32
    return %c0_i32, %c0_i32_0 : i32, i32
  }
  func.func @transform_8(%arg0: i32) -> (i32, i32) {
    %c0_i32 = arith.constant 0 : i32
    %c0_i32_0 = arith.constant 0 : i32
    return %arg0, %c0_i32 : i32, i32
  }
}

</mosaic_0001>

<llo_original>
// kernel: tpu_custom_call.1
$region0: #{tpu_custom_call.1}
  #allocation0 [shape = 'u32[]', space=smem, size = 0x4, offset = 0x4, fixed_abs, tag = 'smem constant byte address 0x4 - core index']
  #allocation1 [shape = 'u32[144,128]{1,0:T(1,128)}', space=vmem, size = 0x12000, scoped, tag = 'internal scratch']
  %s0 = inlined_call_operand.vmem [shape: f32[2,8,128], index: 0, kind: input, shape index: {}]
  %s1 = inlined_call_operand.vmem [shape: f32[128,192], index: 1, kind: input, shape index: {}]
  %s2 = inlined_call_operand.vmem [shape: f32[1,192], index: 2, kind: input, shape index: {}]
  %s3 = inlined_call_operand.vmem [shape: f32[8,192], index: 3, kind: input, shape index: {}]
  %s4 = inlined_call_operand.hbm [shape: f32[192,1024], index: 4, kind: input, shape index: {}]
  %s5 = inlined_call_operand.vmem [shape: f32[1,1024], index: 5, kind: input, shape index: {}]
  %s6 = inlined_call_operand.hbm [shape: f32[1024,128], index: 6, kind: input, shape index: {}]
  %s7 = inlined_call_operand.vmem [shape: f32[1,128], index: 7, kind: input, shape index: {}]
  %s8 = inlined_call_operand.hbm [shape: f32[2,128], index: 8, kind: output, shape index: {}]
  %s9 = sld [smem:[#allocation0]]
  $region50: #{tpu_custom_call.1} parent=0
    _
  %s11 = ssub.s32 1, %s9
  %s12 = scalar_select 0, %s11, %s9
  $region1: #{tpu_custom_call.1} parent=0
    #allocation2 [shape = 'u8[786432]{0}', space=vmem, size = 0xc0000, scoped, tag = 'input window, operand 4, single buffered']
    #allocation3 [shape = 's32[1]{0}', space=sflag, size = 0x4, scoped, tag = 'scoped memory for tpu_custom_call.1']
    #allocation4 [shape = 's32[1]{0}', space=sflag, size = 0x4, scoped, tag = 'scoped memory for tpu_custom_call.1']
    #allocation5 [shape = 'u8[524288]{0}', space=vmem, size = 0x80000, scoped, tag = 'input window, operand 6, single buffered']
    #allocation6 [shape = 's32[1]{0}', space=sflag, size = 0x4, scoped, tag = 'scoped memory for tpu_custom_call.1']
    #allocation7 [shape = 'u8[1024]{0}', space=vmem, size = 0x400, scoped, tag = 'output window, operand 0, single buffered']
    %13 = vsyncpa [#allocation3], 0
    %14 = vsyncpa [#allocation6], 0
    %15 = vsyncpa [#allocation4], 0
    // Predicated region
    $region2: #{tpu_custom_call.1} parent=1 // pred_check
      _
    $region3: #{tpu_custom_call.1} parent=1 // pred_check_branch
      %17 = sbr.rel (0) target = $region5
    $region4: #{tpu_custom_call.1} parent=1 // pred_region
      _
    $region5: #{tpu_custom_call.1} parent=1 // pred_fallthru
      _
    // Predicated region
    $region6: #{tpu_custom_call.1} parent=1 // pred_check
      _
    $region7: #{tpu_custom_call.1} parent=1 // pred_check_branch
      %19 = sbr.rel (0) target = $region9
    $region8: #{tpu_custom_call.1} parent=1 // pred_region
      _
    $region9: #{tpu_custom_call.1} parent=1 // pred_fallthru
      _
    // Predicated region
    $region10: #{tpu_custom_call.1} parent=1 // pred_check
      _
    $region11: #{tpu_custom_call.1} parent=1 // pred_check_branch
      %21 = sbr.rel (0) target = $region13
    $region12: #{tpu_custom_call.1} parent=1 // pred_region
      _
    $region13: #{tpu_custom_call.1} parent=1 // pred_fallthru
      _
    // Predicated region
    $region14: #{tpu_custom_call.1} parent=1 // pred_check
      _
    $region15: #{tpu_custom_call.1} parent=1 // pred_check_branch
      %23 = sbr.rel (0) target = $region17
    $region16: #{tpu_custom_call.1} parent=1 // pred_region
      _
    $region17: #{tpu_custom_call.1} parent=1 // pred_fallthru
      _
    // Predicated region
    $region18: #{tpu_custom_call.1} parent=1 // pred_check
      _
    $region19: #{tpu_custom_call.1} parent=1 // pred_check_branch
      %25 = sbr.rel (0) target = $region21
    $region20: #{tpu_custom_call.1} parent=1 // pred_region
      %s27 = ssub.s32 24576, 24576
      %28 = vsyncadd [#allocation3], %s27
      %s29 = sshll.u32 [#allocation2], 4
      %s30 = int_to_ptr.vmem [resolvable:$true] %s29
      %35 = dma.hbm_to_vmem [thread:$0]  %s4, 24576, %s30, [#allocation3], 1024, 1024, 64
    $region21: #{tpu_custom_call.1} parent=1 // pred_fallthru
      _
    // Predicated region
    $region22: #{tpu_custom_call.1} parent=1 // pred_check
      _
    $region23: #{tpu_custom_call.1} parent=1 // pred_check_branch
      %37 = sbr.rel (0) target = $region25
    $region24: #{tpu_custom_call.1} parent=1 // pred_region
      _
    $region25: #{tpu_custom_call.1} parent=1 // pred_fallthru
      _
    // Predicated region
    $region26: #{tpu_custom_call.1} parent=1 // pred_check
      _
    $region27: #{tpu_custom_call.1} parent=1 // pred_check_branch
      %39 = sbr.rel (0) target = $region29
    $region28: #{tpu_custom_call.1} parent=1 // pred_region
      %s41 = ssub.s32 16384, 16384
      %42 = vsyncadd [#allocation6], %s41
      %s43 = sshll.u32 [#allocation5], 4
      %s44 = int_to_ptr.vmem [resolvable:$true] %s43
      %49 = dma.hbm_to_vmem [thread:$0]  %s6, 16384, %s44, [#allocation6], 128, 128, 8
    $region29: #{tpu_custom_call.1} parent=1 // pred_fallthru
      _
    // Predicated region
    $region30: #{tpu_custom_call.1} parent=1 // pred_check
      _
    $region31: #{tpu_custom_call.1} parent=1 // pred_check_branch
      %51 = sbr.rel (0) target = $region33
    $region32: #{tpu_custom_call.1} parent=1 // pred_region
      _
    $region33: #{tpu_custom_call.1} parent=1 // pred_fallthru
      _
    // Predicated region
    $region34: #{tpu_custom_call.1} parent=1 // pred_check
      _
    $region35: #{tpu_custom_call.1} parent=1 // pred_check_branch
      %53 = sbr.rel (0) target = $region37
    $region36: #{tpu_custom_call.1} parent=1 // pred_region
      %54 = dma.done [#allocation3], 24576
    $region37: #{tpu_custom_call.1} parent=1 // pred_fallthru
      _
    // Predicated region
    $region38: #{tpu_custom_call.1} parent=1 // pred_check
      _
    $region39: #{tpu_custom_call.1} parent=1 // pred_check_branch
      %56 = sbr.rel (0) target = $region41
    $region40: #{tpu_custom_call.1} parent=1 // pred_region
      %57 = dma.done [#allocation6], 16384
    $region41: #{tpu_custom_call.1} parent=1 // pred_fallthru
      _
    %v58 = vld [vmem:[%s0] sm:$0xff]
    %v59 = vld [vmem:[%s0 + $0x8] sm:$0xff]
    %v60 = vld [vmem:[%s1] sm:$0xff]
    %v61 = vld [vmem:[%s1 + $0x8] sm:$0xff]
    %v62 = vld [vmem:[%s1 + $0x10] sm:$0xff]
    %v63 = vld [vmem:[%s1 + $0x18] sm:$0xff]
    %v64 = vld [vmem:[%s1 + $0x20] sm:$0xff]
    %v65 = vld [vmem:[%s1 + $0x28] sm:$0xff]
    %v66 = vld [vmem:[%s1 + $0x30] sm:$0xff]
    %v67 = vld [vmem:[%s1 + $0x38] sm:$0xff]
    %v68 = vld [vmem:[%s1 + $0x40] sm:$0xff]
    %v69 = vld [vmem:[%s1 + $0x48] sm:$0xff]
    %v70 = vld [vmem:[%s1 + $0x50] sm:$0xff]
    %v71 = vld [vmem:[%s1 + $0x58] sm:$0xff]
    %v72 = vld [vmem:[%s1 + $0x60] sm:$0xff]
    %v73 = vld [vmem:[%s1 + $0x68] sm:$0xff]
    %v74 = vld [vmem:[%s1 + $0x70] sm:$0xff]
    %v75 = vld [vmem:[%s1 + $0x78] sm:$0xff]
    %v76 = vld [vmem:[%s1 + $0x80] sm:$0xff]
    %v77 = vld [vmem:[%s1 + $0x88] sm:$0xff]
    %v78 = vld [vmem:[%s1 + $0x90] sm:$0xff]
    %v79 = vld [vmem:[%s1 + $0x98] sm:$0xff]
    %v80 = vld [vmem:[%s1 + $0xa0] sm:$0xff]
    %v81 = vld [vmem:[%s1 + $0xa8] sm:$0xff]
    %v82 = vld [vmem:[%s1 + $0xb0] sm:$0xff]
    %v83 = vld [vmem:[%s1 + $0xb8] sm:$0xff]
    %v84 = vld [vmem:[%s1 + $0xc0] sm:$0xff]
    %v85 = vld [vmem:[%s1 + $0xc8] sm:$0xff]
    %v86 = vld [vmem:[%s1 + $0xd0] sm:$0xff]
    %v87 = vld [vmem:[%s1 + $0xd8] sm:$0xff]
    %v88 = vld [vmem:[%s1 + $0xe0] sm:$0xff]
    %v89 = vld [vmem:[%s1 + $0xe8] sm:$0xff]
    %v90 = vld [vmem:[%s1 + $0xf0] sm:$0xff]
    %v91 = vld [vmem:[%s1 + $0xf8] sm:$0xff]
    %v92 = vld [vmem:[%s2] sm:$0x3]
    %v94 = vlaneseq
    %v95 = vshrl.u32 %v94, 7
    %v96 = vsub.s32 0, %v95
    %v97 = vrot.slane %v92, %v96
    %v98 = vlaneseq
    %v99 = vshrl.u32 %v98, 7
    %v100 = vsub.s32 1, %v99
    %v101 = vrot.slane %v92, %v100
    %104 = vmatprep.subr.mxu0 %v61
    %105 = vmatpush1.msra.mxu0 %v60
    %106 = vmatprep.subr.mxu0 %v63
    %107 = vmatpush1.msra.mxu0 %v62
    %108 = vmatprep.subr.mxu0 %v65
    %109 = vmatpush1.msra.mxu0 %v64
    %110 = vmatprep.subr.mxu0 %v67
    %111 = vmatpush1.msra.mxu0 %v66
    %112 = vmatprep.subr.mxu0 %v69
    %113 = vmatpush1.msra.mxu0 %v68
    %114 = vmatprep.subr.mxu0 %v71
    %115 = vmatpush1.msra.mxu0 %v70
    %116 = vmatprep.subr.mxu0 %v73
    %117 = vmatpush1.msra.mxu0 %v72
    %118 = vmatprep.subr.mxu0 %v75
    %119 = vmatpush1.msra.mxu0 %v74
    %120 = vmatprep.subr.mxu0 %v77
    %121 = vmatpush1.msra.mxu0 %v76
    %122 = vmatprep.subr.mxu0 %v79
    %123 = vmatpush1.msra.mxu0 %v78
    %124 = vmatprep.subr.mxu0 %v81
    %125 = vmatpush1.msra.mxu0 %v80
    %126 = vmatprep.subr.mxu0 %v83
    %127 = vmatpush1.msra.mxu0 %v82
    %128 = vmatprep.subr.mxu0 %v85
    %129 = vmatpush1.msra.mxu0 %v84
    %130 = vmatprep.subr.mxu0 %v87
    %131 = vmatpush1.msra.mxu0 %v86
    %132 = vmatprep.subr.mxu0 %v89
    %133 = vmatpush1.msra.mxu0 %v88
    %134 = vmatprep.subr.mxu0 %v91
    %135 = vmatpush1.msra.mxu0 %v90
    %136 = vmatprep.subr.mxu0 0.0
    %137 = vmatpush1.msra.mxu0 0.0
    %138 = vmatprep.subr.mxu0 0.0
    %139 = vmatpush1.msra.mxu0 0.0
    %140 = vmatprep.subr.mxu0 0.0
    %141 = vmatpush1.msra.mxu0 0.0
    %142 = vmatprep.subr.mxu0 0.0
    %143 = vmatpush1.msra.mxu0 0.0
    %144 = vmatprep.subr.mxu0 0.0
    %145 = vmatpush1.msra.mxu0 0.0
    %146 = vmatprep.subr.mxu0 0.0
    %147 = vmatpush1.msra.mxu0 0.0
    %148 = vmatprep.subr.mxu0 0.0
    %149 = vmatpush1.msra.mxu0 0.0
    %150 = vmatprep.subr.mxu0 0.0
    %151 = vmatpush1.msra.mxu0 0.0
    %152 = vmatprep.subr.mxu0 0.0
    %153 = vmatpush1.msra.mxu0 0.0
    %154 = vmatprep.subr.mxu0 0.0
    %155 = vmatpush1.msra.mxu0 0.0
    %156 = vmatprep.subr.mxu0 0.0
    %157 = vmatpush1.msra.mxu0 0.0
    %158 = vmatprep.subr.mxu0 0.0
    %159 = vmatpush1.msra.mxu0 0.0
    %160 = vmatprep.subr.mxu0 0.0
    %161 = vmatpush1.msra.mxu0 0.0
    %162 = vmatprep.subr.mxu0 0.0
    %163 = vmatpush1.msra.mxu0 0.0
    %164 = vmatprep.subr.mxu0 0.0
    %165 = vmatpush1.msra.mxu0 0.0
    %166 = vmatprep.subr.mxu0 0.0
    %167 = vmatpush1.msra.mxu0 0.0
    %168 = vmatprep.mubr.f32.mxu0 0.0
    %169 = vmatmul.mubr.f32.gmra.mrb[0].mxu0 %v58
    %v170 = vpop.f32.mrb[0].mxu0
    %v171 = vadd.f32 %v97, %v170
    %v172 = vpop.f32.mrb[0].mxu0
    %v173 = vadd.f32 %v101, %v172
    %174 = vmatprep.mubr.f32.mxu0 0.0
    %175 = vmatmul.mubr.f32.gmra.mrb[0].mxu0 %v59
    %v176 = vpop.f32.mrb[0].mxu0
    %v177 = vadd.f32 %v97, %v176
    %v178 = vpop.f32.mrb[0].mxu0
    %v179 = vadd.f32 %v101, %v178
    %180 = vdwg.mxu0
    %v181 = vmax.f32 %v171, 0.0
    %v182 = vmax.f32 %v173, 0.0
    %v183 = vmax.f32 %v177, 0.0
    %v184 = vmax.f32 %v179, 0.0
    %v185 = vld [vmem:[%s3] sm:$0xff]
    %v186 = vld [vmem:[%s3 + $0x8] sm:$0xff]
    %v187 = vmul.f32 %v181, %v185
    %v188 = vmul.f32 %v182, %v186
    %v189 = vmul.f32 %v183, %v185
    %v190 = vmul.f32 %v184, %v186
    %v191 = vrot.slane %v187, 4
    %v192 = vmax.f32 %v187, %v191
    %v193 = vrot.slane %v192, 2
    %v194 = vmax.f32 %v192, %v193
    %v195 = vrot.slane %v194, 1
    %v196 = vmax.f32 %v194, %v195
    %vm197 = vcmask 523264
    %v198 = vsel %vm197, %v188, -inf
    %v199 = vrot.slane %v198, 4
    %v200 = vmax.f32 %v198, %v199
    %v201 = vrot.slane %v200, 2
    %v202 = vmax.f32 %v200, %v201
    %v203 = vrot.slane %v202, 1
    %v204 = vmax.f32 %v202, %v203
    %v205 = vrot.slane %v189, 4
    %v206 = vmax.f32 %v189, %v205
    %v207 = vrot.slane %v206, 2
    %v208 = vmax.f32 %v206, %v207
    %v209 = vrot.slane %v208, 1
    %v210 = vmax.f32 %v208, %v209
    %v211 = vsel %vm197, %v190, -inf
    %v212 = vrot.slane %v211, 4
    %v213 = vmax.f32 %v211, %v212
    %v214 = vrot.slane %v213, 2
    %v215 = vmax.f32 %v213, %v214
    %v216 = vrot.slane %v215, 1
    %v217 = vmax.f32 %v215, %v216
    %v218 = vld [vmem:[#allocation2] sm:$0xff]
    %v219 = vld [vmem:[#allocation2 + $0x8] sm:$0xff]
    %v220 = vld [vmem:[#allocation2 + $0x10] sm:$0xff]
    %v221 = vld [vmem:[#allocation2 + $0x18] sm:$0xff]
    %v222 = vld [vmem:[#allocation2 + $0x20] sm:$0xff]
    %v223 = vld [vmem:[#allocation2 + $0x28] sm:$0xff]
    %v224 = vld [vmem:[#allocation2 + $0x30] sm:$0xff]
    %v225 = vld [vmem:[#allocation2 + $0x38] sm:$0xff]
    %v226 = vld [vmem:[#allocation2 + $0x40] sm:$0xff]
    %v227 = vld [vmem:[#allocation2 + $0x48] sm:$0xff]
    %v228 = vld [vmem:[#allocation2 + $0x50] sm:$0xff]
    %v229 = vld [vmem:[#allocation2 + $0x58] sm:$0xff]
    %v230 = vld [vmem:[#allocation2 + $0x60] sm:$0xff]
    %v231 = vld [vmem:[#allocation2 + $0x68] sm:$0xff]
    %v232 = vld [vmem:[#allocation2 + $0x70] sm:$0xff]
    %v233 = vld [vmem:[#allocation2 + $0x78] sm:$0xff]
    %v234 = vld [vmem:[#allocation2 + $0x80] sm:$0xff]
    %v235 = vld [vmem:[#allocation2 + $0x88] sm:$0xff]
    %v236 = vld [vmem:[#allocation2 + $0x90] sm:$0xff]
    %v237 = vld [vmem:[#allocation2 + $0x98] sm:$0xff]
    %v238 = vld [vmem:[#allocation2 + $0xa0] sm:$0xff]
    %v239 = vld [vmem:[#allocation2 + $0xa8] sm:$0xff]
    %v240 = vld [vmem:[#allocation2 + $0xb0] sm:$0xff]
    %v241 = vld [vmem:[#allocation2 + $0xb8] sm:$0xff]
    %v242 = vld [vmem:[#allocation2 + $0xc0] sm:$0xff]
    %v243 = vld [vmem:[#allocation2 + $0xc8] sm:$0xff]
    %v244 = vld [vmem:[#allocation2 + $0xd0] sm:$0xff]
    %v245 = vld [vmem:[#allocation2 + $0xd8] sm:$0xff]
    %v246 = vld [vmem:[#allocation2 + $0xe0] sm:$0xff]
    %v247 = vld [vmem:[#allocation2 + $0xe8] sm:$0xff]
    %v248 = vld [vmem:[#allocation2 + $0xf0] sm:$0xff]
    %v249 = vld [vmem:[#allocation2 + $0xf8] sm:$0xff]
    %v250 = vld [vmem:[#allocation2 + $0x100] sm:$0xff]
    %v251 = vld [vmem:[#allocation2 + $0x108] sm:$0xff]
    %v252 = vld [vmem:[#allocation2 + $0x110] sm:$0xff]
    %v253 = vld [vmem:[#allocation2 + $0x118] sm:$0xff]
    %v254 = vld [vmem:[#allocation2 + $0x120] sm:$0xff]
    %v255 = vld [vmem:[#allocation2 + $0x128] sm:$0xff]
    %v256 = vld [vmem:[#allocation2 + $0x130] sm:$0xff]
    %v257 = vld [vmem:[#allocation2 + $0x138] sm:$0xff]
    %v258 = vld [vmem:[#allocation2 + $0x140] sm:$0xff]
    %v259 = vld [vmem:[#allocation2 + $0x148] sm:$0xff]
    %v260 = vld [vmem:[#allocation2 + $0x150] sm:$0xff]
    %v261 = vld [vmem:[#allocation2 + $0x158] sm:$0xff]
    %v262 = vld [vmem:[#allocation2 + $0x160] sm:$0xff]
    %v263 = vld [vmem:[#allocation2 + $0x168] sm:$0xff]
    %v264 = vld [vmem:[#allocation2 + $0x170] sm:$0xff]
    %v265 = vld [vmem:[#allocation2 + $0x178] sm:$0xff]
    %v266 = vld [vmem:[#allocation2 + $0x180] sm:$0xff]
    %v267 = vld [vmem:[#allocation2 + $0x188] sm:$0xff]
    %v268 = vld [vmem:[#allocation2 + $0x190] sm:$0xff]
    %v269 = vld [vmem:[#allocation2 + $0x198] sm:$0xff]
    %v270 = vld [vmem:[#allocation2 + $0x1a0] sm:$0xff]
    %v271 = vld [vmem:[#allocation2 + $0x1a8] sm:$0xff]
    %v272 = vld [vmem:[#allocation2 + $0x1b0] sm:$0xff]
    %v273 = vld [vmem:[#allocation2 + $0x1b8] sm:$0xff]
    %v274 = vld [vmem:[#allocation2 + $0x1c0] sm:$0xff]
    %v275 = vld [vmem:[#allocation2 + $0x1c8] sm:$0xff]
    %v276 = vld [vmem:[#allocation2 + $0x1d0] sm:$0xff]
    %v277 = vld [vmem:[#allocation2 + $0x1d8] sm:$0xff]
    %v278 = vld [vmem:[#allocation2 + $0x1e0] sm:$0xff]
    %v279 = vld [vmem:[#allocation2 + $0x1e8] sm:$0xff]
    %v280 = vld [vmem:[#allocation2 + $0x1f0] sm:$0xff]
    %v281 = vld [vmem:[#allocation2 + $0x1f8] sm:$0xff]
    %v282 = vld [vmem:[#allocation2 + $0x200] sm:$0xff]
    %v283 = vld [vmem:[#allocation2 + $0x208] sm:$0xff]
    %v284 = vld [vmem:[#allocation2 + $0x210] sm:$0xff]
    %v285 = vld [vmem:[#allocation2 + $0x218] sm:$0xff]
    %v286 = vld [vmem:[#allocation2 + $0x220] sm:$0xff]
    %v287 = vld [vmem:[#allocation2 + $0x228] sm:$0xff]
    %v288 = vld [vmem:[#allocation2 + $0x230] sm:$0xff]
    %v289 = vld [vmem:[#allocation2 + $0x238] sm:$0xff]
    %v290 = vld [vmem:[#allocation2 + $0x240] sm:$0xff]
    %v291 = vld [vmem:[#allocation2 + $0x248] sm:$0xff]
    %v292 = vld [vmem:[#allocation2 + $0x250] sm:$0xff]
    %v293 = vld [vmem:[#allocation2 + $0x258] sm:$0xff]
    %v294 = vld [vmem:[#allocation2 + $0x260] sm:$0xff]
    %v295 = vld [vmem:[#allocation2 + $0x268] sm:$0xff]
    %v296 = vld [vmem:[#allocation2 + $0x270] sm:$0xff]
    %v297 = vld [vmem:[#allocation2 + $0x278] sm:$0xff]
    %v298 = vld [vmem:[#allocation2 + $0x280] sm:$0xff]
    %v299 = vld [vmem:[#allocation2 + $0x288] sm:$0xff]
    %v300 = vld [vmem:[#allocation2 + $0x290] sm:$0xff]
    %v301 = vld [vmem:[#allocation2 + $0x298] sm:$0xff]
    %v302 = vld [vmem:[#allocation2 + $0x2a0] sm:$0xff]
    %v303 = vld [vmem:[#allocation2 + $0x2a8] sm:$0xff]
    %v304 = vld [vmem:[#allocation2 + $0x2b0] sm:$0xff]
    %v305 = vld [vmem:[#allocation2 + $0x2b8] sm:$0xff]
    %v306 = vld [vmem:[#allocation2 + $0x2c0] sm:$0xff]
    %v307 = vld [vmem:[#allocation2 + $0x2c8] sm:$0xff]
    %v308 = vld [vmem:[#allocation2 + $0x2d0] sm:$0xff]
    %v309 = vld [vmem:[#allocation2 + $0x2d8] sm:$0xff]
    %v310 = vld [vmem:[#allocation2 + $0x2e0] sm:$0xff]
    %v311 = vld [vmem:[#allocation2 + $0x2e8] sm:$0xff]
    %v312 = vld [vmem:[#allocation2 + $0x2f0] sm:$0xff]
    %v313 = vld [vmem:[#allocation2 + $0x2f8] sm:$0xff]
    %v314 = vld [vmem:[#allocation2 + $0x300] sm:$0xff]
    %v315 = vld [vmem:[#allocation2 + $0x308] sm:$0xff]
    %v316 = vld [vmem:[#allocation2 + $0x310] sm:$0xff]
    %v317 = vld [vmem:[#allocation2 + $0x318] sm:$0xff]
    %v318 = vld [vmem:[#allocation2 + $0x320] sm:$0xff]
    %v319 = vld [vmem:[#allocation2 + $0x328] sm:$0xff]
    %v320 = vld [vmem:[#allocation2 + $0x330] sm:$0xff]
    %v321 = vld [vmem:[#allocation2 + $0x338] sm:$0xff]
    %v322 = vld [vmem:[#allocation2 + $0x340] sm:$0xff]
    %v323 = vld [vmem:[#allocation2 + $0x348] sm:$0xff]
    %v324 = vld [vmem:[#allocation2 + $0x350] sm:$0xff]
    %v325 = vld [vmem:[#allocation2 + $0x358] sm:$0xff]
    %v326 = vld [vmem:[#allocation2 + $0x360] sm:$0xff]
    %v327 = vld [vmem:[#allocation2 + $0x368] sm:$0xff]
    %v328 = vld [vmem:[#allocation2 + $0x370] sm:$0xff]
    %v329 = vld [vmem:[#allocation2 + $0x378] sm:$0xff]
    %v330 = vld [vmem:[#allocation2 + $0x380] sm:$0xff]
    %v331 = vld [vmem:[#allocation2 + $0x388] sm:$0xff]
    %v332 = vld [vmem:[#allocation2 + $0x390] sm:$0xff]
    %v333 = vld [vmem:[#allocation2 + $0x398] sm:$0xff]
    %v334 = vld [vmem:[#allocation2 + $0x3a0] sm:$0xff]
    %v335 = vld [vmem:[#allocation2 + $0x3a8] sm:$0xff]
    %v336 = vld [vmem:[#allocation2 + $0x3b0] sm:$0xff]
    %v337 = vld [vmem:[#allocation2 + $0x3b8] sm:$0xff]
    %v338 = vld [vmem:[#allocation2 + $0x3c0] sm:$0xff]
    %v339 = vld [vmem:[#allocation2 + $0x3c8] sm:$0xff]
    %v340 = vld [vmem:[#allocation2 + $0x3d0] sm:$0xff]
    %v341 = vld [vmem:[#allocation2 + $0x3d8] sm:$0xff]
    %v342 = vld [vmem:[#allocation2 + $0x3e0] sm:$0xff]
    %v343 = vld [vmem:[#allocation2 + $0x3e8] sm:$0xff]
    %v344 = vld [vmem:[#allocation2 + $0x3f0] sm:$0xff]
    %v345 = vld [vmem:[#allocation2 + $0x3f8] sm:$0xff]
    %v346 = vld [vmem:[#allocation2 + $0x400] sm:$0xff]
    %v347 = vld [vmem:[#allocation2 + $0x408] sm:$0xff]
    %v348 = vld [vmem:[#allocation2 + $0x410] sm:$0xff]
    %v349 = vld [vmem:[#allocation2 + $0x418] sm:$0xff]
    %v350 = vld [vmem:[#allocation2 + $0x420] sm:$0xff]
    %v351 = vld [vmem:[#allocation2 + $0x428] sm:$0xff]
    %v352 = vld [vmem:[#allocation2 + $0x430] sm:$0xff]
    %v353 = vld [vmem:[#allocation2 + $0x438] sm:$0xff]
    %v354 = vld [vmem:[#allocation2 + $0x440] sm:$0xff]
    %v355 = vld [vmem:[#allocation2 + $0x448] sm:$0xff]
    %v356 = vld [vmem:[#allocation2 + $0x450] sm:$0xff]
    %v357 = vld [vmem:[#allocation2 + $0x458] sm:$0xff]
    %v358 = vld [vmem:[#allocation2 + $0x460] sm:$0xff]
    %v359 = vld [vmem:[#allocation2 + $0x468] sm:$0xff]
    %v360 = vld [vmem:[#allocation2 + $0x470] sm:$0xff]
    %v361 = vld [vmem:[#allocation2 + $0x478] sm:$0xff]
    %v362 = vld [vmem:[#allocation2 + $0x480] sm:$0xff]
    %v363 = vld [vmem:[#allocation2 + $0x488] sm:$0xff]
    %v364 = vld [vmem:[#allocation2 + $0x490] sm:$0xff]
    %v365 = vld [vmem:[#allocation2 + $0x498] sm:$0xff]
    %v366 = vld [vmem:[#allocation2 + $0x4a0] sm:$0xff]
    %v367 = vld [vmem:[#allocation2 + $0x4a8] sm:$0xff]
    %v368 = vld [vmem:[#allocation2 + $0x4b0] sm:$0xff]
    %v369 = vld [vmem:[#allocation2 + $0x4b8] sm:$0xff]
    %v370 = vld [vmem:[#allocation2 + $0x4c0] sm:$0xff]
    %v371 = vld [vmem:[#allocation2 + $0x4c8] sm:$0xff]
    %v372 = vld [vmem:[#allocation2 + $0x4d0] sm:$0xff]
    %v373 = vld [vmem:[#allocation2 + $0x4d8] sm:$0xff]
    %v374 = vld [vmem:[#allocation2 + $0x4e0] sm:$0xff]
    %v375 = vld [vmem:[#allocation2 + $0x4e8] sm:$0xff]
    %v376 = vld [vmem:[#allocation2 + $0x4f0] sm:$0xff]
    %v377 = vld [vmem:[#allocation2 + $0x4f8] sm:$0xff]
    %v378 = vld [vmem:[#allocation2 + $0x500] sm:$0xff]
    %v379 = vld [vmem:[#allocation2 + $0x508] sm:$0xff]
    %v380 = vld [vmem:[#allocation2 + $0x510] sm:$0xff]
    %v381 = vld [vmem:[#allocation2 + $0x518] sm:$0xff]
    %v382 = vld [vmem:[#allocation2 + $0x520] sm:$0xff]
    %v383 = vld [vmem:[#allocation2 + $0x528] sm:$0xff]
    %v384 = vld [vmem:[#allocation2 + $0x530] sm:$0xff]
    %v385 = vld [vmem:[#allocation2 + $0x538] sm:$0xff]
    %v386 = vld [vmem:[#allocation2 + $0x540] sm:$0xff]
    %v387 = vld [vmem:[#allocation2 + $0x548] sm:$0xff]
    %v388 = vld [vmem:[#allocation2 + $0x550] sm:$0xff]
    %v389 = vld [vmem:[#allocation2 + $0x558] sm:$0xff]
    %v390 = vld [vmem:[#allocation2 + $0x560] sm:$0xff]
    %v391 = vld [vmem:[#allocation2 + $0x568] sm:$0xff]
    %v392 = vld [vmem:[#allocation2 + $0x570] sm:$0xff]
    %v393 = vld [vmem:[#allocation2 + $0x578] sm:$0xff]
    %v394 = vld [vmem:[#allocation2 + $0x580] sm:$0xff]
    %v395 = vld [vmem:[#allocation2 + $0x588] sm:$0xff]
    %v396 = vld [vmem:[#allocation2 + $0x590] sm:$0xff]
    %v397 = vld [vmem:[#allocation2 + $0x598] sm:$0xff]
    %v398 = vld [vmem:[#allocation2 + $0x5a0] sm:$0xff]
    %v399 = vld [vmem:[#allocation2 + $0x5a8] sm:$0xff]
    %v400 = vld [vmem:[#allocation2 + $0x5b0] sm:$0xff]
    %v401 = vld [vmem:[#allocation2 + $0x5b8] sm:$0xff]
    %v402 = vld [vmem:[#allocation2 + $0x5c0] sm:$0xff]
    %v403 = vld [vmem:[#allocation2 + $0x5c8] sm:$0xff]
    %v404 = vld [vmem:[#allocation2 + $0x5d0] sm:$0xff]
    %v405 = vld [vmem:[#allocation2 + $0x5d8] sm:$0xff]
    %v406 = vld [vmem:[#allocation2 + $0x5e0] sm:$0xff]
    %v407 = vld [vmem:[#allocation2 + $0x5e8] sm:$0xff]
    %v408 = vld [vmem:[#allocation2 + $0x5f0] sm:$0xff]
    %v409 = vld [vmem:[#allocation2 + $0x5f8] sm:$0xff]
    %v410 = vld [vmem:[%s5] sm:$0xff]
    %v412 = vlaneseq
    %v413 = vshrl.u32 %v412, 7
    %v414 = vsub.s32 0, %v413
    %v415 = vrot.slane %v410, %v414
    %v416 = vlaneseq
    %v417 = vshrl.u32 %v416, 7
    %v418 = vsub.s32 1, %v417
    %v419 = vrot.slane %v410, %v418
    %v420 = vlaneseq
    %v421 = vshrl.u32 %v420, 7
    %v422 = vsub.s32 2, %v421
    %v423 = vrot.slane %v410, %v422
    %v424 = vlaneseq
    %v425 = vshrl.u32 %v424, 7
    %v426 = vsub.s32 3, %v425
    %v427 = vrot.slane %v410, %v426
    %v428 = vlaneseq
    %v429 = vshrl.u32 %v428, 7
    %v430 = vsub.s32 4, %v429
    %v431 = vrot.slane %v410, %v430
    %v432 = vlaneseq
    %v433 = vshrl.u32 %v432, 7
    %v434 = vsub.s32 5, %v433
    %v435 = vrot.slane %v410, %v434
    %v436 = vlaneseq
    %v437 = vshrl.u32 %v436, 7
    %v438 = vsub.s32 6, %v437
    %v439 = vrot.slane %v410, %v438
    %v440 = vlaneseq
    %v441 = vshrl.u32 %v440, 7
    %v442 = vsub.s32 7, %v441
    %v443 = vrot.slane %v410, %v442
    %vm456 = vcmask 1041409
    %v457 = vsel %vm456, %v210, %v196
    %v458 = vsel %vm456, %v217, %v204
    %v460 = vsel %vm197, %v458, 0
    %462 = vmatprep.subr.mxu0 %v219
    %463 = vmatpush1.msra.mxu0 %v218
    %464 = vmatprep.subr.mxu0 %v227
    %465 = vmatpush1.msra.mxu0 %v226
    %466 = vmatprep.subr.mxu0 %v235
    %467 = vmatpush1.msra.mxu0 %v234
    %468 = vmatprep.subr.mxu0 %v243
    %469 = vmatpush1.msra.mxu0 %v242
    %470 = vmatprep.subr.mxu0 %v251
    %471 = vmatpush1.msra.mxu0 %v250
    %472 = vmatprep.subr.mxu0 %v259
    %473 = vmatpush1.msra.mxu0 %v258
    %474 = vmatprep.subr.mxu0 %v267
    %475 = vmatpush1.msra.mxu0 %v266
    %476 = vmatprep.subr.mxu0 %v275
    %477 = vmatpush1.msra.mxu0 %v274
    %478 = vmatprep.subr.mxu0 %v283
    %479 = vmatpush1.msra.mxu0 %v282
    %480 = vmatprep.subr.mxu0 %v291
    %481 = vmatpush1.msra.mxu0 %v290
    %482 = vmatprep.subr.mxu0 %v299
    %483 = vmatpush1.msra.mxu0 %v298
    %484 = vmatprep.subr.mxu0 %v307
    %485 = vmatpush1.msra.mxu0 %v306
    %486 = vmatprep.subr.mxu0 %v315
    %487 = vmatpush1.msra.mxu0 %v314
    %488 = vmatprep.subr.mxu0 %v323
    %489 = vmatpush1.msra.mxu0 %v322
    %490 = vmatprep.subr.mxu0 %v331
    %491 = vmatpush1.msra.mxu0 %v330
    %492 = vmatprep.subr.mxu0 %v339
    %493 = vmatpush1.msra.mxu0 %v338
    %494 = vmatprep.subr.mxu0 %v347
    %495 = vmatpush1.msra.mxu0 %v346
    %496 = vmatprep.subr.mxu0 %v355
    %497 = vmatpush1.msra.mxu0 %v354
    %498 = vmatprep.subr.mxu0 %v363
    %499 = vmatpush1.msra.mxu0 %v362
    %500 = vmatprep.subr.mxu0 %v371
    %501 = vmatpush1.msra.mxu0 %v370
    %502 = vmatprep.subr.mxu0 %v379
    %503 = vmatpush1.msra.mxu0 %v378
    %504 = vmatprep.subr.mxu0 %v387
    %505 = vmatpush1.msra.mxu0 %v386
    %506 = vmatprep.subr.mxu0 %v395
    %507 = vmatpush1.msra.mxu0 %v394
    %508 = vmatprep.subr.mxu0 %v403
    %509 = vmatpush1.msra.mxu0 %v402
    %510 = vmatprep.subr.mxu0 0.0
    %511 = vmatpush1.msra.mxu0 0.0
    %512 = vmatprep.subr.mxu0 0.0
    %513 = vmatpush1.msra.mxu0 0.0
    %514 = vmatprep.subr.mxu0 0.0
    %515 = vmatpush1.msra.mxu0 0.0
    %516 = vmatprep.subr.mxu0 0.0
    %517 = vmatpush1.msra.mxu0 0.0
    %518 = vmatprep.subr.mxu0 0.0
    %519 = vmatpush1.msra.mxu0 0.0
    %520 = vmatprep.subr.mxu0 0.0
    %521 = vmatpush1.msra.mxu0 0.0
    %522 = vmatprep.subr.mxu0 0.0
    %523 = vmatpush1.msra.mxu0 0.0
    %524 = vmatprep.subr.mxu0 0.0
    %525 = vmatpush1.msra.mxu0 0.0
    %526 = vmatprep.mubr.f32.mxu0 %v460
    %527 = vmatmul.mubr.f32.gmra.mrb[0].mxu0 %v457
    %v528 = vpop.f32.mrb[0].mxu0
    %v529 = vadd.f32 %v415, %v528
    %v530 = vpop.f32.mrb[0].mxu0
    %v531 = vadd.f32 %v419, %v530
    %532 = vdwg.mxu0
    %533 = vmatprep.subr.mxu0 %v221
    %534 = vmatpush1.msra.mxu0 %v220
    %535 = vmatprep.subr.mxu0 %v229
    %536 = vmatpush1.msra.mxu0 %v228
    %537 = vmatprep.subr.mxu0 %v237
    %538 = vmatpush1.msra.mxu0 %v236
    %539 = vmatprep.subr.mxu0 %v245
    %540 = vmatpush1.msra.mxu0 %v244
    %541 = vmatprep.subr.mxu0 %v253
    %542 = vmatpush1.msra.mxu0 %v252
    %543 = vmatprep.subr.mxu0 %v261
    %544 = vmatpush1.msra.mxu0 %v260
    %545 = vmatprep.subr.mxu0 %v269
    %546 = vmatpush1.msra.mxu0 %v268
    %547 = vmatprep.subr.mxu0 %v277
    %548 = vmatpush1.msra.mxu0 %v276
    %549 = vmatprep.subr.mxu0 %v285
    %550 = vmatpush1.msra.mxu0 %v284
    %551 = vmatprep.subr.mxu0 %v293
    %552 = vmatpush1.msra.mxu0 %v292
    %553 = vmatprep.subr.mxu0 %v301
    %554 = vmatpush1.msra.mxu0 %v300
    %555 = vmatprep.subr.mxu0 %v309
    %556 = vmatpush1.msra.mxu0 %v308
    %557 = vmatprep.subr.mxu0 %v317
    %558 = vmatpush1.msra.mxu0 %v316
    %559 = vmatprep.subr.mxu0 %v325
    %560 = vmatpush1.msra.mxu0 %v324
    %561 = vmatprep.subr.mxu0 %v333
    %562 = vmatpush1.msra.mxu0 %v332
    %563 = vmatprep.subr.mxu0 %v341
    %564 = vmatpush1.msra.mxu0 %v340
    %565 = vmatprep.subr.mxu0 %v349
    %566 = vmatpush1.msra.mxu0 %v348
    %567 = vmatprep.subr.mxu0 %v357
    %568 = vmatpush1.msra.mxu0 %v356
    %569 = vmatprep.subr.mxu0 %v365
    %570 = vmatpush1.msra.mxu0 %v364
    %571 = vmatprep.subr.mxu0 %v373
    %572 = vmatpush1.msra.mxu0 %v372
    %573 = vmatprep.subr.mxu0 %v381
    %574 = vmatpush1.msra.mxu0 %v380
    %575 = vmatprep.subr.mxu0 %v389
    %576 = vmatpush1.msra.mxu0 %v388
    %577 = vmatprep.subr.mxu0 %v397
    %578 = vmatpush1.msra.mxu0 %v396
    %579 = vmatprep.subr.mxu0 %v405
    %580 = vmatpush1.msra.mxu0 %v404
    %581 = vmatprep.subr.mxu0 0.0
    %582 = vmatpush1.msra.mxu0 0.0
    %583 = vmatprep.subr.mxu0 0.0
    %584 = vmatpush1.msra.mxu0 0.0
    %585 = vmatprep.subr.mxu0 0.0
    %586 = vmatpush1.msra.mxu0 0.0
    %587 = vmatprep.subr.mxu0 0.0
    %588 = vmatpush1.msra.mxu0 0.0
    %589 = vmatprep.subr.mxu0 0.0
    %590 = vmatpush1.msra.mxu0 0.0
    %591 = vmatprep.subr.mxu0 0.0
    %592 = vmatpush1.msra.mxu0 0.0
    %593 = vmatprep.subr.mxu0 0.0
    %594 = vmatpush1.msra.mxu0 0.0
    %595 = vmatprep.subr.mxu0 0.0
    %596 = vmatpush1.msra.mxu0 0.0
    %597 = vmatprep.mubr.f32.mxu0 %v460
    %598 = vmatmul.mubr.f32.gmra.mrb[0].mxu0 %v457
    %v599 = vpop.f32.mrb[0].mxu0
    %v600 = vadd.f32 %v423, %v599
    %v601 = vpop.f32.mrb[0].mxu0
    %v602 = vadd.f32 %v427, %v601
    %603 = vdwg.mxu0
    %604 = vmatprep.subr.mxu0 %v223
    %605 = vmatpush1.msra.mxu0 %v222
    %606 = vmatprep.subr.mxu0 %v231
    %607 = vmatpush1.msra.mxu0 %v230
    %608 = vmatprep.subr.mxu0 %v239
    %609 = vmatpush1.msra.mxu0 %v238
    %610 = vmatprep.subr.mxu0 %v247
    %611 = vmatpush1.msra.mxu0 %v246
    %612 = vmatprep.subr.mxu0 %v255
    %613 = vmatpush1.msra.mxu0 %v254
    %614 = vmatprep.subr.mxu0 %v263
    %615 = vmatpush1.msra.mxu0 %v262
    %616 = vmatprep.subr.mxu0 %v271
    %617 = vmatpush1.msra.mxu0 %v270
    %618 = vmatprep.subr.mxu0 %v279
    %619 = vmatpush1.msra.mxu0 %v278
    %620 = vmatprep.subr.mxu0 %v287
    %621 = vmatpush1.msra.mxu0 %v286
    %622 = vmatprep.subr.mxu0 %v295
    %623 = vmatpush1.msra.mxu0 %v294
    %624 = vmatprep.subr.mxu0 %v303
    %625 = vmatpush1.msra.mxu0 %v302
    %626 = vmatprep.subr.mxu0 %v311
    %627 = vmatpush1.msra.mxu0 %v310
    %628 = vmatprep.subr.mxu0 %v319
    %629 = vmatpush1.msra.mxu0 %v318
    %630 = vmatprep.subr.mxu0 %v327
    %631 = vmatpush1.msra.mxu0 %v326
    %632 = vmatprep.subr.mxu0 %v335
    %633 = vmatpush1.msra.mxu0 %v334
    %634 = vmatprep.subr.mxu0 %v343
    %635 = vmatpush1.msra.mxu0 %v342
    %636 = vmatprep.subr.mxu0 %v351
    %637 = vmatpush1.msra.mxu0 %v350
    %638 = vmatprep.subr.mxu0 %v359
    %639 = vmatpush1.msra.mxu0 %v358
    %640 = vmatprep.subr.mxu0 %v367
    %641 = vmatpush1.msra.mxu0 %v366
    %642 = vmatprep.subr.mxu0 %v375
    %643 = vmatpush1.msra.mxu0 %v374
    %644 = vmatprep.subr.mxu0 %v383
    %645 = vmatpush1.msra.mxu0 %v382
    %646 = vmatprep.subr.mxu0 %v391
    %647 = vmatpush1.msra.mxu0 %v390
    %648 = vmatprep.subr.mxu0 %v399
    %649 = vmatpush1.msra.mxu0 %v398
    %650 = vmatprep.subr.mxu0 %v407
    %651 = vmatpush1.msra.mxu0 %v406
    %652 = vmatprep.subr.mxu0 0.0
    %653 = vmatpush1.msra.mxu0 0.0
    %654 = vmatprep.subr.mxu0 0.0
    %655 = vmatpush1.msra.mxu0 0.0
    %656 = vmatprep.subr.mxu0 0.0
    %657 = vmatpush1.msra.mxu0 0.0
    %658 = vmatprep.subr.mxu0 0.0
    %659 = vmatpush1.msra.mxu0 0.0
    %660 = vmatprep.subr.mxu0 0.0
    %661 = vmatpush1.msra.mxu0 0.0
    %662 = vmatprep.subr.mxu0 0.0
    %663 = vmatpush1.msra.mxu0 0.0
    %664 = vmatprep.subr.mxu0 0.0
    %665 = vmatpush1.msra.mxu0 0.0
    %666 = vmatprep.subr.mxu0 0.0
    %667 = vmatpush1.msra.mxu0 0.0
    %668 = vmatprep.mubr.f32.mxu0 %v460
    %669 = vmatmul.mubr.f32.gmra.mrb[0].mxu0 %v457
    %v670 = vpop.f32.mrb[0].mxu0
    %v671 = vadd.f32 %v431, %v670
    %v672 = vpop.f32.mrb[0].mxu0
    %v673 = vadd.f32 %v435, %v672
    %674 = vdwg.mxu0
    %675 = vmatprep.subr.mxu0 %v225
    %676 = vmatpush1.msra.mxu0 %v224
    %677 = vmatprep.subr.mxu0 %v233
    %678 = vmatpush1.msra.mxu0 %v232
    %679 = vmatprep.subr.mxu0 %v241
    %680 = vmatpush1.msra.mxu0 %v240
    %681 = vmatprep.subr.mxu0 %v249
    %682 = vmatpush1.msra.mxu0 %v248
    %683 = vmatprep.subr.mxu0 %v257
    %684 = vmatpush1.msra.mxu0 %v256
    %685 = vmatprep.subr.mxu0 %v265
    %686 = vmatpush1.msra.mxu0 %v264
    %687 = vmatprep.subr.mxu0 %v273
    %688 = vmatpush1.msra.mxu0 %v272
    %689 = vmatprep.subr.mxu0 %v281
    %690 = vmatpush1.msra.mxu0 %v280
    %691 = vmatprep.subr.mxu0 %v289
    %692 = vmatpush1.msra.mxu0 %v288
    %693 = vmatprep.subr.mxu0 %v297
    %694 = vmatpush1.msra.mxu0 %v296
    %695 = vmatprep.subr.mxu0 %v305
    %696 = vmatpush1.msra.mxu0 %v304
    %697 = vmatprep.subr.mxu0 %v313
    %698 = vmatpush1.msra.mxu0 %v312
    %699 = vmatprep.subr.mxu0 %v321
    %700 = vmatpush1.msra.mxu0 %v320
    %701 = vmatprep.subr.mxu0 %v329
    %702 = vmatpush1.msra.mxu0 %v328
    %703 = vmatprep.subr.mxu0 %v337
    %704 = vmatpush1.msra.mxu0 %v336
    %705 = vmatprep.subr.mxu0 %v345
    %706 = vmatpush1.msra.mxu0 %v344
    %707 = vmatprep.subr.mxu0 %v353
    %708 = vmatpush1.msra.mxu0 %v352
    %709 = vmatprep.subr.mxu0 %v361
    %710 = vmatpush1.msra.mxu0 %v360
    %711 = vmatprep.subr.mxu0 %v369
    %712 = vmatpush1.msra.mxu0 %v368
    %713 = vmatprep.subr.mxu0 %v377
    %714 = vmatpush1.msra.mxu0 %v376
    %715 = vmatprep.subr.mxu0 %v385
    %716 = vmatpush1.msra.mxu0 %v384
    %717 = vmatprep.subr.mxu0 %v393
    %718 = vmatpush1.msra.mxu0 %v392
    %719 = vmatprep.subr.mxu0 %v401
    %720 = vmatpush1.msra.mxu0 %v400
    %721 = vmatprep.subr.mxu0 %v409
    %722 = vmatpush1.msra.mxu0 %v408
    %723 = vmatprep.subr.mxu0 0.0
    %724 = vmatpush1.msra.mxu0 0.0
    %725 = vmatprep.subr.mxu0 0.0
    %726 = vmatpush1.msra.mxu0 0.0
    %727 = vmatprep.subr.mxu0 0.0
    %728 = vmatpush1.msra.mxu0 0.0
    %729 = vmatprep.subr.mxu0 0.0
    %730 = vmatpush1.msra.mxu0 0.0
    %731 = vmatprep.subr.mxu0 0.0
    %732 = vmatpush1.msra.mxu0 0.0
    %733 = vmatprep.subr.mxu0 0.0
    %734 = vmatpush1.msra.mxu0 0.0
    %735 = vmatprep.subr.mxu0 0.0
    %736 = vmatpush1.msra.mxu0 0.0
    %737 = vmatprep.subr.mxu0 0.0
    %738 = vmatpush1.msra.mxu0 0.0
    %739 = vmatprep.mubr.f32.mxu0 %v460
    %740 = vmatmul.mubr.f32.gmra.mrb[0].mxu0 %v457
    %v741 = vpop.f32.mrb[0].mxu0
    %v742 = vadd.f32 %v439, %v741
    %v743 = vpop.f32.mrb[0].mxu0
    %v744 = vadd.f32 %v443, %v743
    %745 = vdwg.mxu0
    %v746 = vmax.f32 %v529, 0.0
    %v747 = vmax.f32 %v531, 0.0
    %v748 = vmax.f32 %v600, 0.0
    %v749 = vmax.f32 %v602, 0.0
    %v750 = vmax.f32 %v671, 0.0
    %v751 = vmax.f32 %v673, 0.0
    %v752 = vmax.f32 %v742, 0.0
    %v753 = vmax.f32 %v744, 0.0
    %v754 = vld [vmem:[#allocation5] sm:$0xff]
    %v755 = vld [vmem:[#allocation5 + $0x8] sm:$0xff]
    %v756 = vld [vmem:[#allocation5 + $0x10] sm:$0xff]
    %v757 = vld [vmem:[#allocation5 + $0x18] sm:$0xff]
    %v758 = vld [vmem:[#allocation5 + $0x20] sm:$0xff]
    %v759 = vld [vmem:[#allocation5 + $0x28] sm:$0xff]
    %v760 = vld [vmem:[#allocation5 + $0x30] sm:$0xff]
    %v761 = vld [vmem:[#allocation5 + $0x38] sm:$0xff]
    %v762 = vld [vmem:[#allocation5 + $0x40] sm:$0xff]
    %v763 = vld [vmem:[#allocation5 + $0x48] sm:$0xff]
    %v764 = vld [vmem:[#allocation5 + $0x50] sm:$0xff]
    %v765 = vld [vmem:[#allocation5 + $0x58] sm:$0xff]
    %v766 = vld [vmem:[#allocation5 + $0x60] sm:$0xff]
    %v767 = vld [vmem:[#allocation5 + $0x68] sm:$0xff]
    %v768 = vld [vmem:[#allocation5 + $0x70] sm:$0xff]
    %v769 = vld [vmem:[#allocation5 + $0x78] sm:$0xff]
    %v770 = vld [vmem:[#allocation5 + $0x80] sm:$0xff]
    %v771 = vld [vmem:[#allocation5 + $0x88] sm:$0xff]
    %v772 = vld [vmem:[#allocation5 + $0x90] sm:$0xff]
    %v773 = vld [vmem:[#allocation5 + $0x98] sm:$0xff]
    %v774 = vld [vmem:[#allocation5 + $0xa0] sm:$0xff]
    %v775 = vld [vmem:[#allocation5 + $0xa8] sm:$0xff]
    %v776 = vld [vmem:[#allocation5 + $0xb0] sm:$0xff]
    %v777 = vld [vmem:[#allocation5 + $0xb8] sm:$0xff]
    %v778 = vld [vmem:[#allocation5 + $0xc0] sm:$0xff]
    %v779 = vld [vmem:[#allocation5 + $0xc8] sm:$0xff]
    %v780 = vld [vmem:[#allocation5 + $0xd0] sm:$0xff]
    %v781 = vld [vmem:[#allocation5 + $0xd8] sm:$0xff]
    %v782 = vld [vmem:[#allocation5 + $0xe0] sm:$0xff]
    %v783 = vld [vmem:[#allocation5 + $0xe8] sm:$0xff]
    %v784 = vld [vmem:[#allocation5 + $0xf0] sm:$0xff]
    %v785 = vld [vmem:[#allocation5 + $0xf8] sm:$0xff]
    %v786 = vld [vmem:[#allocation5 + $0x100] sm:$0xff]
    %v787 = vld [vmem:[#allocation5 + $0x108] sm:$0xff]
    %v788 = vld [vmem:[#allocation5 + $0x110] sm:$0xff]
    %v789 = vld [vmem:[#allocation5 + $0x118] sm:$0xff]
    %v790 = vld [vmem:[#allocation5 + $0x120] sm:$0xff]
    %v791 = vld [vmem:[#allocation5 + $0x128] sm:$0xff]
    %v792 = vld [vmem:[#allocation5 + $0x130] sm:$0xff]
    %v793 = vld [vmem:[#allocation5 + $0x138] sm:$0xff]
    %v794 = vld [vmem:[#allocation5 + $0x140] sm:$0xff]
    %v795 = vld [vmem:[#allocation5 + $0x148] sm:$0xff]
    %v796 = vld [vmem:[#allocation5 + $0x150] sm:$0xff]
    %v797 = vld [vmem:[#allocation5 + $0x158] sm:$0xff]
    %v798 = vld [vmem:[#allocation5 + $0x160] sm:$0xff]
    %v799 = vld [vmem:[#allocation5 + $0x168] sm:$0xff]
    %v800 = vld [vmem:[#allocation5 + $0x170] sm:$0xff]
    %v801 = vld [vmem:[#allocation5 + $0x178] sm:$0xff]
    %v802 = vld [vmem:[#allocation5 + $0x180] sm:$0xff]
    %v803 = vld [vmem:[#allocation5 + $0x188] sm:$0xff]
    %v804 = vld [vmem:[#allocation5 + $0x190] sm:$0xff]
    %v805 = vld [vmem:[#allocation5 + $0x198] sm:$0xff]
    %v806 = vld [vmem:[#allocation5 + $0x1a0] sm:$0xff]
    %v807 = vld [vmem:[#allocation5 + $0x1a8] sm:$0xff]
    %v808 = vld [vmem:[#allocation5 + $0x1b0] sm:$0xff]
    %v809 = vld [vmem:[#allocation5 + $0x1b8] sm:$0xff]
    %v810 = vld [vmem:[#allocation5 + $0x1c0] sm:$0xff]
    %v811 = vld [vmem:[#allocation5 + $0x1c8] sm:$0xff]
    %v812 = vld [vmem:[#allocation5 + $0x1d0] sm:$0xff]
    %v813 = vld [vmem:[#allocation5 + $0x1d8] sm:$0xff]
    %v814 = vld [vmem:[#allocation5 + $0x1e0] sm:$0xff]
    %v815 = vld [vmem:[#allocation5 + $0x1e8] sm:$0xff]
    %v816 = vld [vmem:[#allocation5 + $0x1f0] sm:$0xff]
    %v817 = vld [vmem:[#allocation5 + $0x1f8] sm:$0xff]
    %v818 = vld [vmem:[#allocation5 + $0x200] sm:$0xff]
    %v819 = vld [vmem:[#allocation5 + $0x208] sm:$0xff]
    %v820 = vld [vmem:[#allocation5 + $0x210] sm:$0xff]
    %v821 = vld [vmem:[#allocation5 + $0x218] sm:$0xff]
    %v822 = vld [vmem:[#allocation5 + $0x220] sm:$0xff]
    %v823 = vld [vmem:[#allocation5 + $0x228] sm:$0xff]
    %v824 = vld [vmem:[#allocation5 + $0x230] sm:$0xff]
    %v825 = vld [vmem:[#allocation5 + $0x238] sm:$0xff]
    %v826 = vld [vmem:[#allocation5 + $0x240] sm:$0xff]
    %v827 = vld [vmem:[#allocation5 + $0x248] sm:$0xff]
    %v828 = vld [vmem:[#allocation5 + $0x250] sm:$0xff]
    %v829 = vld [vmem:[#allocation5 + $0x258] sm:$0xff]
    %v830 = vld [vmem:[#allocation5 + $0x260] sm:$0xff]
    %v831 = vld [vmem:[#allocation5 + $0x268] sm:$0xff]
    %v832 = vld [vmem:[#allocation5 + $0x270] sm:$0xff]
    %v833 = vld [vmem:[#allocation5 + $0x278] sm:$0xff]
    %v834 = vld [vmem:[#allocation5 + $0x280] sm:$0xff]
    %v835 = vld [vmem:[#allocation5 + $0x288] sm:$0xff]
    %v836 = vld [vmem:[#allocation5 + $0x290] sm:$0xff]
    %v837 = vld [vmem:[#allocation5 + $0x298] sm:$0xff]
    %v838 = vld [vmem:[#allocation5 + $0x2a0] sm:$0xff]
    %v839 = vld [vmem:[#allocation5 + $0x2a8] sm:$0xff]
    %v840 = vld [vmem:[#allocation5 + $0x2b0] sm:$0xff]
    %v841 = vld [vmem:[#allocation5 + $0x2b8] sm:$0xff]
    %v842 = vld [vmem:[#allocation5 + $0x2c0] sm:$0xff]
    %v843 = vld [vmem:[#allocation5 + $0x2c8] sm:$0xff]
    %v844 = vld [vmem:[#allocation5 + $0x2d0] sm:$0xff]
    %v845 = vld [vmem:[#allocation5 + $0x2d8] sm:$0xff]
    %v846 = vld [vmem:[#allocation5 + $0x2e0] sm:$0xff]
    %v847 = vld [vmem:[#allocation5 + $0x2e8] sm:$0xff]
    %v848 = vld [vmem:[#allocation5 + $0x2f0] sm:$0xff]
    %v849 = vld [vmem:[#allocation5 + $0x2f8] sm:$0xff]
    %v850 = vld [vmem:[#allocation5 + $0x300] sm:$0xff]
    %v851 = vld [vmem:[#allocation5 + $0x308] sm:$0xff]
    %v852 = vld [vmem:[#allocation5 + $0x310] sm:$0xff]
    %v853 = vld [vmem:[#allocation5 + $0x318] sm:$0xff]
    %v854 = vld [vmem:[#allocation5 + $0x320] sm:$0xff]
    %v855 = vld [vmem:[#allocation5 + $0x328] sm:$0xff]
    %v856 = vld [vmem:[#allocation5 + $0x330] sm:$0xff]
    %v857 = vld [vmem:[#allocation5 + $0x338] sm:$0xff]
    %v858 = vld [vmem:[#allocation5 + $0x340] sm:$0xff]
    %v859 = vld [vmem:[#allocation5 + $0x348] sm:$0xff]
    %v860 = vld [vmem:[#allocation5 + $0x350] sm:$0xff]
    %v861 = vld [vmem:[#allocation5 + $0x358] sm:$0xff]
    %v862 = vld [vmem:[#allocation5 + $0x360] sm:$0xff]
    %v863 = vld [vmem:[#allocation5 + $0x368] sm:$0xff]
    %v864 = vld [vmem:[#allocation5 + $0x370] sm:$0xff]
    %v865 = vld [vmem:[#allocation5 + $0x378] sm:$0xff]
    %v866 = vld [vmem:[#allocation5 + $0x380] sm:$0xff]
    %v867 = vld [vmem:[#allocation5 + $0x388] sm:$0xff]
    %v868 = vld [vmem:[#allocation5 + $0x390] sm:$0xff]
    %v869 = vld [vmem:[#allocation5 + $0x398] sm:$0xff]
    %v870 = vld [vmem:[#allocation5 + $0x3a0] sm:$0xff]
    %v871 = vld [vmem:[#allocation5 + $0x3a8] sm:$0xff]
    %v872 = vld [vmem:[#allocation5 + $0x3b0] sm:$0xff]
    %v873 = vld [vmem:[#allocation5 + $0x3b8] sm:$0xff]
    %v874 = vld [vmem:[#allocation5 + $0x3c0] sm:$0xff]
    %v875 = vld [vmem:[#allocation5 + $0x3c8] sm:$0xff]
    %v876 = vld [vmem:[#allocation5 + $0x3d0] sm:$0xff]
    %v877 = vld [vmem:[#allocation5 + $0x3d8] sm:$0xff]
    %v878 = vld [vmem:[#allocation5 + $0x3e0] sm:$0xff]
    %v879 = vld [vmem:[#allocation5 + $0x3e8] sm:$0xff]
    %v880 = vld [vmem:[#allocation5 + $0x3f0] sm:$0xff]
    %v881 = vld [vmem:[#allocation5 + $0x3f8] sm:$0xff]
    %v882 = vld [vmem:[%s7] sm:$0x1]
    %v884 = vlaneseq
    %v885 = vshrl.u32 %v884, 7
    %v886 = vsub.s32 0, %v885
    %v887 = vrot.slane %v882, %v886
    %889 = vmatprep.subr.mxu0 0.0
    %890 = vmatpush1.msra.mxu0 %v754
    %891 = vmatprep.subr.mxu0 0.0
    %892 = vmatpush1.msra.mxu0 %v755
    %893 = vmatprep.subr.mxu0 0.0
    %894 = vmatpush1.msra.mxu0 %v756
    %895 = vmatprep.subr.mxu0 0.0
    %896 = vmatpush1.msra.mxu0 %v757
    %897 = vmatprep.subr.mxu0 0.0
    %898 = vmatpush1.msra.mxu0 %v758
    %899 = vmatprep.subr.mxu0 0.0
    %900 = vmatpush1.msra.mxu0 %v759
    %901 = vmatprep.subr.mxu0 0.0
    %902 = vmatpush1.msra.mxu0 %v760
    %903 = vmatprep.subr.mxu0 0.0
    %904 = vmatpush1.msra.mxu0 %v761
    %905 = vmatprep.subr.mxu0 0.0
    %906 = vmatpush1.msra.mxu0 %v762
    %907 = vmatprep.subr.mxu0 0.0
    %908 = vmatpush1.msra.mxu0 %v763
    %909 = vmatprep.subr.mxu0 0.0
    %910 = vmatpush1.msra.mxu0 %v764
    %911 = vmatprep.subr.mxu0 0.0
    %912 = vmatpush1.msra.mxu0 %v765
    %913 = vmatprep.subr.mxu0 0.0
    %914 = vmatpush1.msra.mxu0 %v766
    %915 = vmatprep.subr.mxu0 0.0
    %916 = vmatpush1.msra.mxu0 %v767
    %917 = vmatprep.subr.mxu0 0.0
    %918 = vmatpush1.msra.mxu0 %v768
    %919 = vmatprep.subr.mxu0 0.0
    %920 = vmatpush1.msra.mxu0 %v769
    %921 = vmatprep.subr.mxu0 0.0
    %922 = vmatpush1.msra.mxu0 %v770
    %923 = vmatprep.subr.mxu0 0.0
    %924 = vmatpush1.msra.mxu0 %v771
    %925 = vmatprep.subr.mxu0 0.0
    %926 = vmatpush1.msra.mxu0 %v772
    %927 = vmatprep.subr.mxu0 0.0
    %928 = vmatpush1.msra.mxu0 %v773
    %929 = vmatprep.subr.mxu0 0.0
    %930 = vmatpush1.msra.mxu0 %v774
    %931 = vmatprep.subr.mxu0 0.0
    %932 = vmatpush1.msra.mxu0 %v775
    %933 = vmatprep.subr.mxu0 0.0
    %934 = vmatpush1.msra.mxu0 %v776
    %935 = vmatprep.subr.mxu0 0.0
    %936 = vmatpush1.msra.mxu0 %v777
    %937 = vmatprep.subr.mxu0 0.0
    %938 = vmatpush1.msra.mxu0 %v778
    %939 = vmatprep.subr.mxu0 0.0
    %940 = vmatpush1.msra.mxu0 %v779
    %941 = vmatprep.subr.mxu0 0.0
    %942 = vmatpush1.msra.mxu0 %v780
    %943 = vmatprep.subr.mxu0 0.0
    %944 = vmatpush1.msra.mxu0 %v781
    %945 = vmatprep.subr.mxu0 0.0
    %946 = vmatpush1.msra.mxu0 %v782
    %947 = vmatprep.subr.mxu0 0.0
    %948 = vmatpush1.msra.mxu0 %v783
    %949 = vmatprep.subr.mxu0 0.0
    %950 = vmatpush1.msra.mxu0 %v784
    %951 = vmatprep.subr.mxu0 0.0
    %952 = vmatpush1.msra.mxu0 %v785
    %953 = vmatprep.mubr.f32.mxu0 %v747
    %954 = vmatmul.mubr.f32.gmra.mrb[0].mxu0 %v746
    %v955 = vpop.f32.mrb[0].mxu0
    %v956 = vadd.f32 %v887, %v955
    %v957 = vpop.f32.mrb[0].mxu0
    %958 = vdwg.mxu0
    %959 = vmatprep.subr.mxu0 0.0
    %960 = vmatpush1.msra.mxu0 %v786
    %961 = vmatprep.subr.mxu0 0.0
    %962 = vmatpush1.msra.mxu0 %v787
    %963 = vmatprep.subr.mxu0 0.0
    %964 = vmatpush1.msra.mxu0 %v788
    %965 = vmatprep.subr.mxu0 0.0
    %966 = vmatpush1.msra.mxu0 %v789
    %967 = vmatprep.subr.mxu0 0.0
    %968 = vmatpush1.msra.mxu0 %v790
    %969 = vmatprep.subr.mxu0 0.0
    %970 = vmatpush1.msra.mxu0 %v791
    %971 = vmatprep.subr.mxu0 0.0
    %972 = vmatpush1.msra.mxu0 %v792
    %973 = vmatprep.subr.mxu0 0.0
    %974 = vmatpush1.msra.mxu0 %v793
    %975 = vmatprep.subr.mxu0 0.0
    %976 = vmatpush1.msra.mxu0 %v794
    %977 = vmatprep.subr.mxu0 0.0
    %978 = vmatpush1.msra.mxu0 %v795
    %979 = vmatprep.subr.mxu0 0.0
    %980 = vmatpush1.msra.mxu0 %v796
    %981 = vmatprep.subr.mxu0 0.0
    %982 = vmatpush1.msra.mxu0 %v797
    %983 = vmatprep.subr.mxu0 0.0
    %984 = vmatpush1.msra.mxu0 %v798
    %985 = vmatprep.subr.mxu0 0.0
    %986 = vmatpush1.msra.mxu0 %v799
    %987 = vmatprep.subr.mxu0 0.0
    %988 = vmatpush1.msra.mxu0 %v800
    %989 = vmatprep.subr.mxu0 0.0
    %990 = vmatpush1.msra.mxu0 %v801
    %991 = vmatprep.subr.mxu0 0.0
    %992 = vmatpush1.msra.mxu0 %v802
    %993 = vmatprep.subr.mxu0 0.0
    %994 = vmatpush1.msra.mxu0 %v803
    %995 = vmatprep.subr.mxu0 0.0
    %996 = vmatpush1.msra.mxu0 %v804
    %997 = vmatprep.subr.mxu0 0.0
    %998 = vmatpush1.msra.mxu0 %v805
    %999 = vmatprep.subr.mxu0 0.0
    %1000 = vmatpush1.msra.mxu0 %v806
    %1001 = vmatprep.subr.mxu0 0.0
    %1002 = vmatpush1.msra.mxu0 %v807
    %1003 = vmatprep.subr.mxu0 0.0
    %1004 = vmatpush1.msra.mxu0 %v808
    %1005 = vmatprep.subr.mxu0 0.0
    %1006 = vmatpush1.msra.mxu0 %v809
    %1007 = vmatprep.subr.mxu0 0.0
    %1008 = vmatpush1.msra.mxu0 %v810
    %1009 = vmatprep.subr.mxu0 0.0
    %1010 = vmatpush1.msra.mxu0 %v811
    %1011 = vmatprep.subr.mxu0 0.0
    %1012 = vmatpush1.msra.mxu0 %v812
    %1013 = vmatprep.subr.mxu0 0.0
    %1014 = vmatpush1.msra.mxu0 %v813
    %1015 = vmatprep.subr.mxu0 0.0
    %1016 = vmatpush1.msra.mxu0 %v814
    %1017 = vmatprep.subr.mxu0 0.0
    %1018 = vmatpush1.msra.mxu0 %v815
    %1019 = vmatprep.subr.mxu0 0.0
    %1020 = vmatpush1.msra.mxu0 %v816
    %1021 = vmatprep.subr.mxu0 0.0
    %1022 = vmatpush1.msra.mxu0 %v817
    %1023 = vmatprep.mubr.f32.mxu0 %v749
    %1024 = vmatmul.mubr.f32.gmra.mrb[0].mxu0 %v748
    %v1025 = vpop.f32.mrb[0].mxu0
    %v1026 = vadd.f32 %v956, %v1025
    %v1027 = vpop.f32.mrb[0].mxu0
    %1028 = vdwg.mxu0
    %1029 = vmatprep.subr.mxu0 0.0
    %1030 = vmatpush1.msra.mxu0 %v818
    %1031 = vmatprep.subr.mxu0 0.0
    %1032 = vmatpush1.msra.mxu0 %v819
    %1033 = vmatprep.subr.mxu0 0.0
    %1034 = vmatpush1.msra.mxu0 %v820
    %1035 = vmatprep.subr.mxu0 0.0
    %1036 = vmatpush1.msra.mxu0 %v821
    %1037 = vmatprep.subr.mxu0 0.0
    %1038 = vmatpush1.msra.mxu0 %v822
    %1039 = vmatprep.subr.mxu0 0.0
    %1040 = vmatpush1.msra.mxu0 %v823
    %1041 = vmatprep.subr.mxu0 0.0
    %1042 = vmatpush1.msra.mxu0 %v824
    %1043 = vmatprep.subr.mxu0 0.0
    %1044 = vmatpush1.msra.mxu0 %v825
    %1045 = vmatprep.subr.mxu0 0.0
    %1046 = vmatpush1.msra.mxu0 %v826
    %1047 = vmatprep.subr.mxu0 0.0
    %1048 = vmatpush1.msra.mxu0 %v827
    %1049 = vmatprep.subr.mxu0 0.0
    %1050 = vmatpush1.msra.mxu0 %v828
    %1051 = vmatprep.subr.mxu0 0.0
    %1052 = vmatpush1.msra.mxu0 %v829
    %1053 = vmatprep.subr.mxu0 0.0
    %1054 = vmatpush1.msra.mxu0 %v830
    %1055 = vmatprep.subr.mxu0 0.0
    %1056 = vmatpush1.msra.mxu0 %v831
    %1057 = vmatprep.subr.mxu0 0.0
    %1058 = vmatpush1.msra.mxu0 %v832
    %1059 = vmatprep.subr.mxu0 0.0
    %1060 = vmatpush1.msra.mxu0 %v833
    %1061 = vmatprep.subr.mxu0 0.0
    %1062 = vmatpush1.msra.mxu0 %v834
    %1063 = vmatprep.subr.mxu0 0.0
    %1064 = vmatpush1.msra.mxu0 %v835
    %1065 = vmatprep.subr.mxu0 0.0
    %1066 = vmatpush1.msra.mxu0 %v836
    %1067 = vmatprep.subr.mxu0 0.0
    %1068 = vmatpush1.msra.mxu0 %v837
    %1069 = vmatprep.subr.mxu0 0.0
    %1070 = vmatpush1.msra.mxu0 %v838
    %1071 = vmatprep.subr.mxu0 0.0
    %1072 = vmatpush1.msra.mxu0 %v839
    %1073 = vmatprep.subr.mxu0 0.0
    %1074 = vmatpush1.msra.mxu0 %v840
    %1075 = vmatprep.subr.mxu0 0.0
    %1076 = vmatpush1.msra.mxu0 %v841
    %1077 = vmatprep.subr.mxu0 0.0
    %1078 = vmatpush1.msra.mxu0 %v842
    %1079 = vmatprep.subr.mxu0 0.0
    %1080 = vmatpush1.msra.mxu0 %v843
    %1081 = vmatprep.subr.mxu0 0.0
    %1082 = vmatpush1.msra.mxu0 %v844
    %1083 = vmatprep.subr.mxu0 0.0
    %1084 = vmatpush1.msra.mxu0 %v845
    %1085 = vmatprep.subr.mxu0 0.0
    %1086 = vmatpush1.msra.mxu0 %v846
    %1087 = vmatprep.subr.mxu0 0.0
    %1088 = vmatpush1.msra.mxu0 %v847
    %1089 = vmatprep.subr.mxu0 0.0
    %1090 = vmatpush1.msra.mxu0 %v848
    %1091 = vmatprep.subr.mxu0 0.0
    %1092 = vmatpush1.msra.mxu0 %v849
    %1093 = vmatprep.mubr.f32.mxu0 %v751
    %1094 = vmatmul.mubr.f32.gmra.mrb[0].mxu0 %v750
    %v1095 = vpop.f32.mrb[0].mxu0
    %v1096 = vadd.f32 %v1026, %v1095
    %v1097 = vpop.f32.mrb[0].mxu0
    %1098 = vdwg.mxu0
    %1099 = vmatprep.subr.mxu0 0.0
    %1100 = vmatpush1.msra.mxu0 %v850
    %1101 = vmatprep.subr.mxu0 0.0
    %1102 = vmatpush1.msra.mxu0 %v851
    %1103 = vmatprep.subr.mxu0 0.0
    %1104 = vmatpush1.msra.mxu0 %v852
    %1105 = vmatprep.subr.mxu0 0.0
    %1106 = vmatpush1.msra.mxu0 %v853
    %1107 = vmatprep.subr.mxu0 0.0
    %1108 = vmatpush1.msra.mxu0 %v854
    %1109 = vmatprep.subr.mxu0 0.0
    %1110 = vmatpush1.msra.mxu0 %v855
    %1111 = vmatprep.subr.mxu0 0.0
    %1112 = vmatpush1.msra.mxu0 %v856
    %1113 = vmatprep.subr.mxu0 0.0
    %1114 = vmatpush1.msra.mxu0 %v857
    %1115 = vmatprep.subr.mxu0 0.0
    %1116 = vmatpush1.msra.mxu0 %v858
    %1117 = vmatprep.subr.mxu0 0.0
    %1118 = vmatpush1.msra.mxu0 %v859
    %1119 = vmatprep.subr.mxu0 0.0
    %1120 = vmatpush1.msra.mxu0 %v860
    %1121 = vmatprep.subr.mxu0 0.0
    %1122 = vmatpush1.msra.mxu0 %v861
    %1123 = vmatprep.subr.mxu0 0.0
    %1124 = vmatpush1.msra.mxu0 %v862
    %1125 = vmatprep.subr.mxu0 0.0
    %1126 = vmatpush1.msra.mxu0 %v863
    %1127 = vmatprep.subr.mxu0 0.0
    %1128 = vmatpush1.msra.mxu0 %v864
    %1129 = vmatprep.subr.mxu0 0.0
    %1130 = vmatpush1.msra.mxu0 %v865
    %1131 = vmatprep.subr.mxu0 0.0
    %1132 = vmatpush1.msra.mxu0 %v866
    %1133 = vmatprep.subr.mxu0 0.0
    %1134 = vmatpush1.msra.mxu0 %v867
    %1135 = vmatprep.subr.mxu0 0.0
    %1136 = vmatpush1.msra.mxu0 %v868
    %1137 = vmatprep.subr.mxu0 0.0
    %1138 = vmatpush1.msra.mxu0 %v869
    %1139 = vmatprep.subr.mxu0 0.0
    %1140 = vmatpush1.msra.mxu0 %v870
    %1141 = vmatprep.subr.mxu0 0.0
    %1142 = vmatpush1.msra.mxu0 %v871
    %1143 = vmatprep.subr.mxu0 0.0
    %1144 = vmatpush1.msra.mxu0 %v872
    %1145 = vmatprep.subr.mxu0 0.0
    %1146 = vmatpush1.msra.mxu0 %v873
    %1147 = vmatprep.subr.mxu0 0.0
    %1148 = vmatpush1.msra.mxu0 %v874
    %1149 = vmatprep.subr.mxu0 0.0
    %1150 = vmatpush1.msra.mxu0 %v875
    %1151 = vmatprep.subr.mxu0 0.0
    %1152 = vmatpush1.msra.mxu0 %v876
    %1153 = vmatprep.subr.mxu0 0.0
    %1154 = vmatpush1.msra.mxu0 %v877
    %1155 = vmatprep.subr.mxu0 0.0
    %1156 = vmatpush1.msra.mxu0 %v878
    %1157 = vmatprep.subr.mxu0 0.0
    %1158 = vmatpush1.msra.mxu0 %v879
    %1159 = vmatprep.subr.mxu0 0.0
    %1160 = vmatpush1.msra.mxu0 %v880
    %1161 = vmatprep.subr.mxu0 0.0
    %1162 = vmatpush1.msra.mxu0 %v881
    %1163 = vmatprep.mubr.f32.mxu0 %v753
    %1164 = vmatmul.mubr.f32.gmra.mrb[0].mxu0 %v752
    %v1165 = vpop.f32.mrb[0].mxu0
    %v1166 = vadd.f32 %v1096, %v1165
    %v1167 = vpop.f32.mrb[0].mxu0
    %1168 = vdwg.mxu0
    %1169 = vst [vmem:[#allocation7] sm:$0x3] %v1166
    // Predicated region
    $region42: #{tpu_custom_call.1} parent=1 // pred_check
      _
    $region43: #{tpu_custom_call.1} parent=1 // pred_check_branch
      %1171 = sbr.rel (0) target = $region45
    $region44: #{tpu_custom_call.1} parent=1 // pred_region
      %s1173 = ssub.s32 32, 32
      %1174 = vsyncadd [#allocation4], %s1173
      %s1176 = sshll.u32 [#allocation7], 4
      %s1177 = int_to_ptr.vmem [resolvable:$true] %s1176
      %1179 = dma.vmem_to_hbm [thread:$0]  %s1177, 32, %s8, [#allocation4]
    $region45: #{tpu_custom_call.1} parent=1 // pred_fallthru
      _
    // Predicated region
    $region46: #{tpu_custom_call.1} parent=1 // pred_check
      _
    $region47: #{tpu_custom_call.1} parent=1 // pred_check_branch
      %1181 = sbr.rel (0) target = $region49
    $region48: #{tpu_custom_call.1} parent=1 // pred_region
      %1182 = dma.done [#allocation4], 32
    $region49: #{tpu_custom_call.1} parent=1 // pred_fallthru
      _
    %1183 = vsyncpa [#allocation3], 1
    %1184 = vsyncpa [#allocation6], 1
    %1185 = vsyncpa [#allocation4], 1

</llo_original>
